<compile_context>
chip_gen: v7x
topology: tpu7x:2x2x1
jax: 0.10.0
libtpu: 0.0.40
codegen_flags: <defaults>
</compile_context>

<pallas_src>
from functools import partial

import jax
import jax.numpy as jnp
from jax.experimental import pallas as pl
from jax.experimental.pallas import tpu as pltpu

_SUBLANE = 8
_LANE = 128


def _round_up(x, m):
    return ((x + m - 1) // m) * m


# ----------------------------------------------------------------------------
# Fused kernel:  out = ReLU([LN]( X @ W' (+ C @ Wc') + shift' ))
#   - W' has bias + eval-BatchNorm scale pre-folded (wrapper);
#   - shift' = b*scale + (bn_b - bn_rm*scale)   (absent when no BN and no bias);
#   - optional K-tiling accumulates into a f32 VMEM scratch.
# ----------------------------------------------------------------------------
def _fclayer_kernel(*refs, has_cat, has_shift, use_layer_norm, ln_eps, multi_k):
    pos = 0
    x_ref = refs[pos]; pos += 1
    w_ref = refs[pos]; pos += 1
    if has_cat:
        c_ref = refs[pos]
        wc_ref = refs[pos + 1]
        pos += 2
    if has_shift:
        shift_ref = refs[pos]; pos += 1
    o_ref = refs[pos]; pos += 1
    acc_ref = refs[pos] if multi_k else None

    def epilogue(z):
        if has_cat:
            # hstack([X, onehot]) @ W^T  ==  X @ Wx' + onehot @ Wc'  (concat folded away)
            z = z + jnp.dot(c_ref[...], wc_ref[...],
                            preferred_element_type=jnp.float32)
        if has_shift:
            z = z + shift_ref[...]                       # folded bias + BN shift
        if use_layer_norm:                               # LayerNorm(elementwise_affine=False)
            mean = jnp.mean(z, axis=-1, keepdims=True)
            var = jnp.maximum(jnp.mean(z * z, axis=-1, keepdims=True) - mean * mean, 0.0)
            z = (z - mean) * jax.lax.rsqrt(var + ln_eps)
        return jnp.maximum(z, 0.0).astype(o_ref.dtype)   # ReLU; Dropout = identity (eval)

    if not multi_k:
        z = jnp.dot(x_ref[...], w_ref[...], preferred_element_type=jnp.float32)
        o_ref[...] = epilogue(z)
    else:
        k = pl.program_id(1)

        @pl.when(k == 0)
        def _():
            acc_ref[...] = jnp.zeros_like(acc_ref)

        acc_ref[...] += jnp.dot(x_ref[...], w_ref[...],
                                preferred_element_type=jnp.float32)

        @pl.when(k == pl.num_programs(1) - 1)
        def _():
            o_ref[...] = epilogue(acc_ref[...])


# ----------------------------------------------------------------------------
# Wrapper
# ----------------------------------------------------------------------------
def fclayer_forward(x, params, *, cat_onehot=None, use_batch_norm=True,
                    use_layer_norm=False, bn_eps=1e-3, ln_eps=1e-5,
                    compute_dtype=jnp.float32, out_dtype=jnp.float32,
                    block_rows=None, k_block=None,
                    vmem_budget_bytes=24 * 1024 * 1024):
    """Single-pallas_call FCLayer forward (eval mode).

    params:
      w  : (out_dim, in_dim [+ cat_dim])   -- PyTorch nn.Linear layout
      b  : (out_dim,) optional
      bn_g, bn_b, bn_rm, bn_rv : (out_dim,) BatchNorm1d affine + running stats
    cat_onehot : optional (N, cat_dim) one-hot block (cat_embedding='onehot' path).
    """
    # TODO(synk): cat_embedding='embedding' (nn.Embedding gather), training-mode BatchNorm
    #             stat updates and Dropout RNG, and non-ReLU activation_fn are not implemented.
    x = jnp.asarray(x)
    n, in_dim = x.shape
    w = jnp.asarray(params["w"], jnp.float32)
    out_dim = w.shape[0]
    b = params.get("b", None)
    has_bias = b is not None

    # ---- fold bias + eval-mode BatchNorm into the weights and one shift vector ----
    if use_batch_norm:
        scale = (jnp.asarray(params["bn_g"], jnp.float32)
                 * jax.lax.rsqrt(jnp.asarray(params["bn_rv"], jnp.float32) + bn_eps))
        shift = jnp.asarray(params["bn_b"], jnp.float32) \
            - jnp.asarray(params["bn_rm"], jnp.float32) * scale
        w = w * scale[:, None]
        if has_bias:
            shift = shift + jnp.asarray(b, jnp.float32) * scale
        has_shift = True
    else:
        shift = jnp.asarray(b, jnp.float32) if has_bias else None
        has_shift = has_bias

    # ---- split / pre-transpose weights ONCE to (in, out); onehot concat folded away ----
    has_cat = cat_onehot is not None
    if has_cat:
        c = jnp.asarray(cat_onehot)
        cdim = c.shape[1]
        w_x_t = w[:, :in_dim].T                       # (in_dim, out_dim)
        wc_t = w[:, in_dim:in_dim + cdim].T           # (cdim,   out_dim)
    else:
        c = None
        cdim = 0
        w_x_t = w.T
        wc_t = None

    # ---- dtypes: matmul operands in compute_dtype, accumulate + epilogue in f32 ----
    itemsize = jnp.dtype(compute_dtype).itemsize
    out_itemsize = jnp.dtype(out_dtype).itemsize
    x = x.astype(compute_dtype)
    w_x_t = w_x_t.astype(compute_dtype)
    if has_cat:
        c = c.astype(compute_dtype)
        wc_t = wc_t.astype(compute_dtype)

    budget = int(vmem_budget_bytes)

    def w_tile_bytes(tk):                              # weight tile, double-buffered
        return 2 * tk * out_dim * itemsize

    # ---- K (in_dim) tiling ----
    if k_block is not None:
        tk = min(int(k_block), in_dim)
        if tk < in_dim:
            tk = _round_up(tk, _LANE)
    elif w_tile_bytes(in_dim) <= budget // 2:
        tk = in_dim
    else:
        tk = _LANE
        while w_tile_bytes(2 * tk) <= budget // 2 and 2 * tk < in_dim:
            tk *= 2
    if tk >= in_dim:
        tk = in_dim
        in_padded = in_dim
    else:
        in_padded = _round_up(in_dim, tk)
    nk = max(1, in_padded // tk)
    multi_k = nk > 1

    # ---- row tiling from the remaining VMEM budget ----
    per_row = (2 * tk * itemsize                       # X tile, double-buffered
               + 2 * out_dim * out_itemsize            # output tile, double-buffered
               + (out_dim * 4 if multi_k else 0)       # f32 accumulator scratch
               + (2 * cdim * itemsize if has_cat else 0))
    rem = max(budget - w_tile_bytes(tk), per_row * _SUBLANE)
    rows_cap = max(_SUBLANE, min(1024, (rem // per_row) // _SUBLANE * _SUBLANE))

    n_pad8 = _round_up(n, _SUBLANE)
    if block_rows is not None:
        br = _round_up(int(block_rows), _SUBLANE)
    elif n_pad8 <= _SUBLANE:
        br = n_pad8
    else:
        # at least 2 row tiles so the "parallel" axis shards across both TensorCores (v7x)
        br = min(rows_cap, _round_up((n_pad8 + 1) // 2, _SUBLANE))
    br = max(_SUBLANE, min(br, n_pad8))
    n_padded = _round_up(n, br)
    n_row_tiles = n_padded // br

    # ---- padding (zero rows / zero K columns contribute nothing; rows sliced off) ----
    if n_padded != n or in_padded != in_dim:
        x = jnp.pad(x, ((0, n_padded - n), (0, in_padded - in_dim)))
    if in_padded != in_dim:
        w_x_t = jnp.pad(w_x_t, ((0, in_padded - in_dim), (0, 0)))
    if has_cat and n_padded != n:
        c = jnp.pad(c, ((0, n_padded - n), (0, 0)))

    # ---- specs / operands ----
    grid = (n_row_tiles, nk)
    in_specs = [pl.BlockSpec((br, tk), lambda i, k: (i, k)),
                pl.BlockSpec((tk, out_dim), lambda i, k: (k, 0))]
    operands = [x, w_x_t]
    if has_cat:
        in_specs += [pl.BlockSpec((br, cdim), lambda i, k: (i, 0)),
                     pl.BlockSpec((cdim, out_dim), lambda i, k: (0, 0))]
        operands += [c, wc_t]
    if has_shift:
        in_specs += [pl.BlockSpec((1, out_dim), lambda i, k: (0, 0))]
        operands += [shift.reshape(1, out_dim).astype(jnp.float32)]
    out_specs = pl.BlockSpec((br, out_dim), lambda i, k: (i, 0))
    scratch_shapes = [pltpu.VMEM((br, out_dim), jnp.float32)] if multi_k else []

    # explicit scoped-VMEM limit sized to the footprint (v5e default is only 16 MiB,
    # v7x physical is 64 MiB -> cap at a safe 32 MiB)
    footprint = (w_tile_bytes(tk) + br * per_row
                 + (2 * cdim * out_dim * itemsize if has_cat else 0)
                 + (2 * out_dim * 4 if has_shift else 0))
    vmem_limit = int(min(max(footprint + (4 << 20), 16 << 20), 32 << 20))

    out = pl.pallas_call(
        partial(_fclayer_kernel, has_cat=has_cat, has_shift=has_shift,
                use_layer_norm=use_layer_norm, ln_eps=ln_eps, multi_k=multi_k),
        out_shape=jax.ShapeDtypeStruct((n_padded, out_dim), out_dtype),
        grid=grid,
        in_specs=in_specs,
        out_specs=out_specs,
        scratch_shapes=scratch_shapes,
        compiler_params=pltpu.CompilerParams(
            dimension_semantics=("parallel", "arbitrary"),
            vmem_limit_bytes=vmem_limit),
    )(*operands)

    return out[:n] if n_padded != n else out


# ----------------------------------------------------------------------------
# Pure-JAX reference (mirrors PyTorch eval semantics) for correctness checking.
# ----------------------------------------------------------------------------
def fclayer_ref(x, params, cat_onehot=None, use_batch_norm=True,
                use_layer_norm=False, bn_eps=1e-3, ln_eps=1e-5):
    x = jnp.asarray(x, jnp.float32)
    if cat_onehot is not None:
        x = jnp.concatenate([x, jnp.asarray(cat_onehot, jnp.float32)], axis=1)
    z = x @ params["w"].T + params["b"]
    if use_batch_norm:
        z = ((z - params["bn_rm"]) * jax.lax.rsqrt(params["bn_rv"] + bn_eps)
             * params["bn_g"] + params["bn_b"])
    if use_layer_norm:
        mean = z.mean(-1, keepdims=True)
        var = ((z - mean) ** 2).mean(-1, keepdims=True)
        z = (z - mean) * jax.lax.rsqrt(var + ln_eps)
    return jnp.maximum(z, 0.0)


# ----------------------------------------------------------------------------
# Main
# ----------------------------------------------------------------------------
if __name__ == "__main__":
    out_dim = 128                                   # lane-dense output
    n_cat_list = (4, 6)                             # onehot: cat_dimension = 10
    cat_dimension = sum(n_cat_list)

    key = jax.random.PRNGKey(0)
    ks = jax.random.split(key, 14)

    def make_params(kw, kb, in_total):
        return {
            "w": 0.05 * jax.random.normal(kw, (out_dim, in_total), dtype=jnp.float32),
            "b": 0.05 * jax.random.normal(kb, (out_dim,), dtype=jnp.float32),
            "bn_g": 1.0 + 0.05 * jax.random.normal(ks[5], (out_dim,), dtype=jnp.float32),
            "bn_b": 0.05 * jax.random.normal(ks[6], (out_dim,), dtype=jnp.float32),
            "bn_rm": 0.05 * jax.random.normal(ks[7], (out_dim,), dtype=jnp.float32),
            "bn_rv": 1.0 + jnp.abs(
                0.05 * jax.random.normal(ks[8], (out_dim,), dtype=jnp.float32)),
        }

    # ---- case 1: n_cat_list is None (Linear -> BN(eval) -> ReLU -> Dropout), 2 row tiles ----
    batch, in_dim = 16, 32
    X = jax.random.normal(ks[0], (batch, in_dim), dtype=jnp.float32)
    params = make_params(ks[3], ks[4], in_dim)
    out1 = jax.block_until_ready(fclayer_forward(X, params))
    ref1 = fclayer_ref(X, params)
    assert out1.shape == (batch, out_dim), out1.shape
    assert jnp.allclose(out1, ref1, atol=2e-4, rtol=2e-4)

    # ---- case 2: onehot categorical covariates (hstack folded into the kernel) ----
    params_cat = make_params(ks[9], ks[4], in_dim + cat_dimension)
    cat0 = jax.random.randint(ks[1], (batch,), 0, n_cat_list[0])
    cat1 = jax.random.randint(ks[2], (batch,), 0, n_cat_list[1])
    onehot = jnp.concatenate(
        [jax.nn.one_hot(cat0, n_cat_list[0], dtype=jnp.float32),
         jax.nn.one_hot(cat1, n_cat_list[1], dtype=jnp.float32)], axis=1)
    out2 = jax.block_until_ready(fclayer_forward(X, params_cat, cat_onehot=onehot))
    ref2 = fclayer_ref(X, params_cat, cat_onehot=onehot)
    assert out2.shape == (batch, out_dim), out2.shape
    assert jnp.allclose(out2, ref2, atol=2e-4, rtol=2e-4)

    # ---- case 3: ragged batch (padded row tiles) + BatchNorm + LayerNorm ----
    n_rag = 13
    X3 = jax.random.normal(ks[10], (n_rag, in_dim), dtype=jnp.float32)
    out3 = jax.block_until_ready(
        fclayer_forward(X3, params, use_layer_norm=True))
    ref3 = fclayer_ref(X3, params, use_layer_norm=True)
    assert out3.shape == (n_rag, out_dim), out3.shape
    assert jnp.allclose(out3, ref3, atol=5e-4, rtol=5e-4)

    # ---- case 4: K-tiled accumulation path (in_dim not a multiple of the K tile) ----
    in_dim4 = 200
    X4 = jax.random.normal(ks[11], (batch, in_dim4), dtype=jnp.float32)
    params4 = make_params(ks[12], ks[13], in_dim4)
    out4 = jax.block_until_ready(fclayer_forward(X4, params4, k_block=128))
    ref4 = fclayer_ref(X4, params4)
    assert out4.shape == (batch, out_dim), out4.shape
    assert jnp.allclose(out4, ref4, atol=5e-4, rtol=5e-4)

    # ---- case 5: bf16 matmul operands (f32 accumulate + f32 epilogue) ----
    out5 = jax.block_until_ready(
        fclayer_forward(X, params_cat, cat_onehot=onehot,
                        compute_dtype=jnp.bfloat16, out_dtype=jnp.float32))
    assert out5.shape == (batch, out_dim), out5.shape
    assert jnp.allclose(out5, ref2, atol=5e-2, rtol=5e-2)

    for o in (out1, out2, out3, out4, out5):
        assert bool(jnp.all(jnp.isfinite(o)))
    print("KERNEL_OK")
</pallas_src>

<mosaic_0001>
module attributes {stable_mosaic.version = 11 : i64} {
  func.func @_fclayer_kernel(%arg0: i32, %arg1: i32, %arg2: memref<8x32xf32, #tpu.memory_space<vmem>>, %arg3: memref<32x128xf32, #tpu.memory_space<vmem>>, %arg4: memref<1x128xf32, #tpu.memory_space<vmem>>, %arg5: memref<8x128xf32, #tpu.memory_space<vmem>>) attributes {dimension_semantics = [#tpu.dimension_semantics<parallel>, #tpu.dimension_semantics<arbitrary>], iteration_bounds = array<i64: 2, 1>, scalar_prefetch = 0 : i64, scratch_operands = 0 : i64, tpu.core_type = #tpu.core_type<tc>, window_params = [{transform_indices = @transform_0, window_bounds = array<i64: 8, 32>}, {transform_indices = @transform_1, window_bounds = array<i64: 32, 128>}, {pipeline_mode = #tpu.pipeline_mode<synchronous>, transform_indices = @transform_2, window_bounds = array<i64: 1, 128>}, {transform_indices = @transform_3, window_bounds = array<i64: 8, 128>}]} {
    %c0 = arith.constant 0 : index
    %c0_0 = arith.constant 0 : index
    %0 = vector.load %arg2[%c0, %c0_0] : memref<8x32xf32, #tpu.memory_space<vmem>>, vector<8x32xf32>
    %c0_1 = arith.constant 0 : index
    %c0_2 = arith.constant 0 : index
    %1 = vector.load %arg3[%c0_1, %c0_2] : memref<32x128xf32, #tpu.memory_space<vmem>>, vector<32x128xf32>
    %cst = arith.constant dense<0.000000e+00> : vector<8x128xf32>
    %2 = tpu.matmul %0, %1, %cst {dimension_numbers = #tpu.dot_dimension_numbers<[1], [0], [0], [1], [0, 0, 1, 1], [], []>} : vector<8x32xf32>, vector<32x128xf32>, vector<8x128xf32> -> vector<8x128xf32>
    %c0_3 = arith.constant 0 : index
    %c0_4 = arith.constant 0 : index
    %3 = vector.load %arg4[%c0_3, %c0_4] : memref<1x128xf32, #tpu.memory_space<vmem>>, vector<1x128xf32>
    %4 = vector.broadcast %3 : vector<1x128xf32> to vector<8x128xf32>
    %5 = arith.addf %2, %4 : vector<8x128xf32>
    %cst_5 = arith.constant 0.000000e+00 : f32
    %6 = vector.broadcast %cst_5 : f32 to vector<8x128xf32>
    %7 = arith.maximumf %5, %6 : vector<8x128xf32>
    %c0_6 = arith.constant 0 : index
    %c0_7 = arith.constant 0 : index
    %8 = vector.load %arg5[%c0_6, %c0_7] : memref<8x128xf32, #tpu.memory_space<vmem>>, vector<8x128xf32>
    tpu.vector_store %arg5[%c0_6, %c0_7], %7 {strides = array<i32>} : memref<8x128xf32, #tpu.memory_space<vmem>>, vector<8x128xf32>,
    return
  }
  func.func @transform_0(%arg0: i32, %arg1: i32) -> (i32, i32) {
    %c0_i32 = arith.constant 0 : i32
    return %arg0, %arg1 : i32, i32
  }
  func.func @transform_1(%arg0: i32, %arg1: i32) -> (i32, i32) {
    %c0_i32 = arith.constant 0 : i32
    %c0_i32_0 = arith.constant 0 : i32
    return %arg1, %c0_i32 : i32, i32
  }
  func.func @transform_2(%arg0: i32, %arg1: i32) -> (i32, i32) {
    %c0_i32 = arith.constant 0 : i32
    %c0_i32_0 = arith.constant 0 : i32
    %c0_i32_1 = arith.constant 0 : i32
    return %c0_i32, %c0_i32_0 : i32, i32
  }
  func.func @transform_3(%arg0: i32, %arg1: i32) -> (i32, i32) {
    %c0_i32 = arith.constant 0 : i32
    %c0_i32_0 = arith.constant 0 : i32
    return %arg0, %c0_i32 : i32, i32
  }
}

</mosaic_0001>

<llo_original>
// kernel: tpu_custom_call.1
$region0: #{tpu_custom_call.1}
  #allocation0 [shape = 'u32[]', space=smem, size = 0x4, offset = 0x4, fixed_abs, tag = 'smem constant byte address 0x4 - core index']
  #allocation1 [shape = 'u32[144,128]{1,0:T(1,128)}', space=vmem, size = 0x12000, scoped, tag = 'internal scratch']
  %s0 = inlined_call_operand.hbm [shape: f32[16,32], index: 0, kind: input, shape index: {}]
  %s1 = inlined_call_operand.hbm [shape: f32[32,128], index: 1, kind: input, shape index: {}]
  %s2 = inlined_call_operand.vmem [shape: f32[1,128], index: 2, kind: input, shape index: {}]
  %s3 = inlined_call_operand.hbm [shape: f32[16,128], index: 3, kind: output, shape index: {}]
  %s4 = sld [smem:[#allocation0]]
  $region53: #{tpu_custom_call.1} parent=0
    _
  %s6 = ssub.s32 1, %s4
  %s7 = scalar_select 0, %s6, %s4
  $region1: #{tpu_custom_call.1} parent=0
    #allocation2 [shape = 'u8[8192]{0}', space=vmem, size = 0x2000, scoped, tag = 'input window, operand 0']
    #allocation3 [shape = 's32[2]{0}', space=sflag, size = 0x8, scoped, tag = 'scoped memory for tpu_custom_call.1']
    #allocation4 [shape = 's32[2]{0}', space=sflag, size = 0x8, scoped, tag = 'scoped memory for tpu_custom_call.1']
    #allocation5 [shape = 'u8[16384]{0}', space=vmem, size = 0x4000, scoped, tag = 'input window, operand 1, single buffered']
    #allocation6 [shape = 's32[1]{0}', space=sflag, size = 0x4, scoped, tag = 'scoped memory for tpu_custom_call.1']
    #allocation7 [shape = 'u8[8192]{0}', space=vmem, size = 0x2000, scoped, tag = 'output window, operand 0']
    %8 = vsyncpa [#allocation3], 0
    %s9 = scalar_lea.sflag [#allocation3], 1
    %10 = vsyncpa %s9, 0
    %11 = vsyncpa [#allocation6], 0
    %12 = vsyncpa [#allocation4], 0
    %s13 = scalar_lea.sflag [#allocation4], 1
    %14 = vsyncpa %s13, 0
    loop: start=0, step=1, limit=4
    $region2: #{tpu_custom_call.1} parent=1 // loop_pre_header
      _
    $region3: #{tpu_custom_call.1} parent=1 // loop_header
      %s16 = sphi 0, %s20
      %p17 = scmp.ge.s32.totalorder %s16, 4
      %s23 = sphi 0, %s35
      %s24 = sphi 0, %s31
      %s25 = sphi 0, %s23
      %s26 = sphi 0, %s24
      %s27 = sphi 0, %s25
      %s28 = sphi 0, %s26
      %s40 = sphi 0, %s42
      %s43 = sphi 0, %s40
      %s44 = sphi 0, %s43
      %s60 = sphi 0, %s44
      %s66 = sphi 0, %s68
      %s69 = sphi 0, %s66
      %s70 = sphi 0, %s69
      %s86 = sphi 0, %s70
      %s90 = sphi 0, %s90
      %s92 = sphi 0, %s90
      %s93 = sphi 0, %s92
      %s107 = sphi 0, %s93
      %s113 = sphi 0, %s115
      %s116 = sphi 0, %s113
      %s117 = sphi 0, %s116
      %s133 = sphi 0, %s117
    $region4: #{tpu_custom_call.1} parent=1 // loop_header_branch
      %19 = sbr.rel (%p17) target = $region8
    $region5: #{tpu_custom_call.1} parent=1 // loop_body
      %s21 = ssub.s32 %s16, 1
      %s22 = ssub.s32 %s16, 2
      %s29 = sadd.s32 1, %s24
      %p30 = scmp.ge.s32.totalorder %s29, 1
      %s31 = scalar_select %p30, 0, %s29
      %s32 = sadd.s32 1, %s23
      %s33 = scalar_select %p30, %s32, %s23
      %p34 = scmp.ge.s32.totalorder %s33, 2
      %s35 = scalar_select %p34, 0, %s33
      %s36 = ssub.s32 %s23, %s35
      %s37 = ssub.s32 %s24, %s31
      %s38 = sor.u32 %s36, %s37
      %p39 = scmp.eq.s32.totalorder %s38, 0
      %s41 = sadd.s32 %s40, 1
      %s42 = scalar_select %p39, %s40, %s41
      %p45 = pneg %p39
      %p46 = scmp.eq.s32.totalorder %s16, 1
      %p47 = por %p45, %p46
      %p48 = scmp.ne.s32.totalorder %s40, %s43
      %p49 = scmp.eq.s32.totalorder %s16, 0
      %p50 = por %p48, %p49
      %p51 = scmp.ne.s32.totalorder %s40, %s43
      %p52 = scmp.eq.s32.totalorder %s21, 1
      %p53 = por %p51, %p52
      %p54 = scmp.ne.s32.totalorder %s43, %s44
      %p55 = scmp.eq.s32.totalorder %s21, 0
      %p56 = por %p54, %p55
      %p57 = scmp.ne.s32.totalorder %s43, %s44
      %p58 = scmp.eq.s32.totalorder %s22, 1
      %p59 = por %p57, %p58
      %p61 = scmp.ne.s32.totalorder %s44, %s60
      %p62 = scmp.eq.s32.totalorder %s22, 0
      %p63 = por %p61, %p62
      %s64 = ssub.s32 %s24, %s31
      %p65 = scmp.eq.s32.totalorder %s64, 0
      %s67 = sadd.s32 %s66, 1
      %s68 = scalar_select %p65, %s66, %s67
      %p71 = pneg %p65
      %p72 = scmp.eq.s32.totalorder %s16, 1
      %p73 = por %p71, %p72
      %p74 = scmp.ne.s32.totalorder %s66, %s69
      %p75 = scmp.eq.s32.totalorder %s16, 0
      %p76 = por %p74, %p75
      %p77 = scmp.ne.s32.totalorder %s66, %s69
      %p78 = scmp.eq.s32.totalorder %s21, 1
      %p79 = por %p77, %p78
      %p80 = scmp.ne.s32.totalorder %s69, %s70
      %p81 = scmp.eq.s32.totalorder %s21, 0
      %p82 = por %p80, %p81
      %p83 = scmp.ne.s32.totalorder %s69, %s70
      %p84 = scmp.eq.s32.totalorder %s22, 1
      %p85 = por %p83, %p84
      %p87 = scmp.ne.s32.totalorder %s70, %s86
      %p88 = scmp.eq.s32.totalorder %s22, 0
      %p89 = por %p87, %p88
      %s91 = sadd.s32 %s90, 1
      %p94 = scmp.eq.s32.totalorder %s16, 1
      %p95 = scmp.ne.s32.totalorder %s90, %s92
      %p96 = scmp.eq.s32.totalorder %s16, 0
      %p97 = por %p95, %p96
      %p98 = scmp.ne.s32.totalorder %s90, %s92
      %p99 = scmp.eq.s32.totalorder %s21, 1
      %p100 = por %p98, %p99
      %p101 = scmp.ne.s32.totalorder %s92, %s93
      %p102 = scmp.eq.s32.totalorder %s21, 0
      %p103 = por %p101, %p102
      %p104 = scmp.ne.s32.totalorder %s92, %s93
      %p105 = scmp.eq.s32.totalorder %s22, 1
      %p106 = por %p104, %p105
      %p108 = scmp.ne.s32.totalorder %s93, %s107
      %p109 = scmp.eq.s32.totalorder %s22, 0
      %p110 = por %p108, %p109
      %s111 = ssub.s32 %s23, %s35
      %p112 = scmp.eq.s32.totalorder %s111, 0
      %s114 = sadd.s32 %s113, 1
      %s115 = scalar_select %p112, %s113, %s114
      %p118 = pneg %p112
      %p119 = scmp.eq.s32.totalorder %s16, 1
      %p120 = por %p118, %p119
      %p121 = scmp.ne.s32.totalorder %s113, %s116
      %p122 = scmp.eq.s32.totalorder %s16, 0
      %p123 = por %p121, %p122
      %p124 = scmp.ne.s32.totalorder %s113, %s116
      %p125 = scmp.eq.s32.totalorder %s21, 1
      %p126 = por %p124, %p125
      %p127 = scmp.ne.s32.totalorder %s116, %s117
      %p128 = scmp.eq.s32.totalorder %s21, 0
      %p129 = por %p127, %p128
      %p130 = scmp.ne.s32.totalorder %s116, %s117
      %p131 = scmp.eq.s32.totalorder %s22, 1
      %p132 = por %p130, %p131
      %p134 = scmp.ne.s32.totalorder %s117, %s133
      %p135 = scmp.eq.s32.totalorder %s22, 0
      %p136 = por %p134, %p135
      %p137 = scmp.le.s32.totalorder 1, %s16
      %p138 = scmp.lt.s32.totalorder %s16, 3
      %p139 = pnand %p137, %p138
      %p140 = pneg %p139
      // Predicated region
      $region9: #{tpu_custom_call.1} parent=5 // pred_check
        _
      $region10: #{tpu_custom_call.1} parent=5 // pred_check_branch
        %142 = sbr.rel (%p139) target = $region12
      $region11: #{tpu_custom_call.1} parent=5 // pred_region
        %s143 = ssub.s32 %s16, 1
        // Predicated region
        $region13: #{tpu_custom_call.1} parent=11 // pred_check
          %p144 = pneg %p82
        $region14: #{tpu_custom_call.1} parent=11 // pred_check_branch
          %146 = sbr.rel (%p144) target = $region16
        $region15: #{tpu_custom_call.1} parent=11 // pred_region
          %s147 = smul.u32 4, %s26
          %s149 = ssub.s32 512, 512
          %150 = vsyncadd [#allocation6], %s149
          %s151 = smul.addr %s147, 128
          %s152 = scalar_lea.hbm %s1, %s151
          %s153 = sshll.u32 [#allocation5], 4
          %s154 = int_to_ptr.vmem [resolvable:$true] %s153
          %159 = dma.hbm_to_vmem [thread:$0]  %s152, 512, %s154, [#allocation6], 128, 128, 8
        $region16: #{tpu_custom_call.1} parent=11 // pred_fallthru
          _
        // Predicated region
        $region17: #{tpu_custom_call.1} parent=11 // pred_check
          %p160 = pneg %p103
        $region18: #{tpu_custom_call.1} parent=11 // pred_check_branch
          %162 = sbr.rel (%p160) target = $region20
        $region19: #{tpu_custom_call.1} parent=11 // pred_region
          _
        $region20: #{tpu_custom_call.1} parent=11 // pred_fallthru
          _
      $region12: #{tpu_custom_call.1} parent=5 // pred_fallthru
        _
      %p163 = scmp.lt.s32.totalorder %s16, 2
      // Predicated region
      $region21: #{tpu_custom_call.1} parent=5 // pred_check
        %p164 = pneg %p163
      $region22: #{tpu_custom_call.1} parent=5 // pred_check_branch
        %166 = sbr.rel (%p164) target = $region24
      $region23: #{tpu_custom_call.1} parent=5 // pred_region
        // Predicated region
        $region25: #{tpu_custom_call.1} parent=23 // pred_check
          %p167 = pneg %p50
        $region26: #{tpu_custom_call.1} parent=23 // pred_check_branch
          %169 = sbr.rel (%p167) target = $region28
        $region27: #{tpu_custom_call.1} parent=23 // pred_region
          %s170 = sand.u32 %s40, 1
          %s171 = scalar_lea.sflag [#allocation3], %s170
          %s172 = sand.u32 %s40, 1
          %s173 = smul.addr %s172, 8
          %s174 = scalar_lea.vmem [#allocation2], %s173
          %s176 = ssub.s32 128, 128
          %177 = vsyncadd %s171, %s176
          %s178 = sadd.s32 %s24, %s23
          %s179 = smul.addr %s178, 128
          %s180 = scalar_lea.hbm %s0, %s179
          %s182 = sshll.u32 %s174, 4
          %s183 = int_to_ptr.vmem [resolvable:$true] %s182
          %185 = dma.hbm_to_vmem [thread:$0]  %s180, 128, %s183, %s171
        $region28: #{tpu_custom_call.1} parent=23 // pred_fallthru
          _
      $region24: #{tpu_custom_call.1} parent=5 // pred_fallthru
        _
      %p186 = scmp.le.s32.totalorder 1, %s16
      %p187 = scmp.lt.s32.totalorder %s16, 3
      %p188 = pnand %p186, %p187
      %p189 = pneg %p188
      // Predicated region
      $region29: #{tpu_custom_call.1} parent=5 // pred_check
        _
      $region30: #{tpu_custom_call.1} parent=5 // pred_check_branch
        %191 = sbr.rel (%p188) target = $region32
      $region31: #{tpu_custom_call.1} parent=5 // pred_region
        %s192 = ssub.s32 %s16, 1
        %s193 = sand.u32 %s43, 1
        %s194 = scalar_lea.sflag [#allocation3], %s193
        %s195 = sand.u32 %s43, 1
        %s196 = smul.addr %s195, 8
        %s197 = scalar_lea.vmem [#allocation2], %s196
        // Predicated region
        $region33: #{tpu_custom_call.1} parent=31 // pred_check
          %p198 = pneg %p56
        $region34: #{tpu_custom_call.1} parent=31 // pred_check_branch
          %200 = sbr.rel (%p198) target = $region36
        $region35: #{tpu_custom_call.1} parent=31 // pred_region
          %201 = dma.done %s194, 128
        $region36: #{tpu_custom_call.1} parent=31 // pred_fallthru
          _
        // Predicated region
        $region37: #{tpu_custom_call.1} parent=31 // pred_check
          %p202 = pneg %p82
        $region38: #{tpu_custom_call.1} parent=31 // pred_check_branch
          %204 = sbr.rel (%p202) target = $region40
        $region39: #{tpu_custom_call.1} parent=31 // pred_region
          %205 = dma.done [#allocation6], 512
        $region40: #{tpu_custom_call.1} parent=31 // pred_fallthru
          _
        %s206 = sand.u32 %s43, 1
        %s207 = scalar_lea.sflag [#allocation3], %s206
        %s208 = sand.u32 %s43, 1
        %s209 = smul.addr %s208, 8
        %s210 = scalar_lea.vmem [#allocation2], %s209
        %p211 = pneg %p56
        %p212 = pneg %p53
        %p213 = pneg %p82
        %p214 = pneg %p79
        %p215 = pneg %p103
        %p216 = pneg %p100
        %p217 = pneg %p129
        %p218 = pneg %p126
        %s219 = sand.u32 %s116, 1
        %s220 = scalar_lea.sflag [#allocation4], %s219
        %s221 = sand.u32 %s116, 1
        %s222 = smul.addr %s221, 8
        %s223 = scalar_lea.vmem [#allocation7], %s222
        %s224 = smul.u32 4, %s26
        %v225 = vld [vmem:[%s197] sm:$0xff]
        %v226 = vld [vmem:[#allocation5] sm:$0xff]
        %v227 = vld [vmem:[#allocation5 + $0x8] sm:$0xff]
        %v228 = vld [vmem:[#allocation5 + $0x10] sm:$0xff]
        %v229 = vld [vmem:[#allocation5 + $0x18] sm:$0xff]
        %v230 = vld [vmem:[%s2] sm:$0x1]
        %v232 = vlaneseq
        %v233 = vshrl.u32 %v232, 7
        %v234 = vsub.s32 0, %v233
        %v235 = vrot.slane %v230, %v234
        %vm237 = vcmask 261120
        %v239 = vsel %vm237, %v225, 0
        %241 = vmatprep.subr.mxu0 0.0
        %242 = vmatpush1.msra.mxu0 %v226
        %243 = vmatprep.subr.mxu0 0.0
        %244 = vmatpush1.msra.mxu0 %v227
        %245 = vmatprep.subr.mxu0 0.0
        %246 = vmatpush1.msra.mxu0 %v228
        %247 = vmatprep.subr.mxu0 0.0
        %248 = vmatpush1.msra.mxu0 %v229
        %249 = vmatprep.subr.mxu0 0.0
        %250 = vmatpush1.msra.mxu0 0.0
        %251 = vmatprep.subr.mxu0 0.0
        %252 = vmatpush1.msra.mxu0 0.0
        %253 = vmatprep.subr.mxu0 0.0
        %254 = vmatpush1.msra.mxu0 0.0
        %255 = vmatprep.subr.mxu0 0.0
        %256 = vmatpush1.msra.mxu0 0.0
        %257 = vmatprep.subr.mxu0 0.0
        %258 = vmatpush1.msra.mxu0 0.0
        %259 = vmatprep.subr.mxu0 0.0
        %260 = vmatpush1.msra.mxu0 0.0
        %261 = vmatprep.subr.mxu0 0.0
        %262 = vmatpush1.msra.mxu0 0.0
        %263 = vmatprep.subr.mxu0 0.0
        %264 = vmatpush1.msra.mxu0 0.0
        %265 = vmatprep.subr.mxu0 0.0
        %266 = vmatpush1.msra.mxu0 0.0
        %267 = vmatprep.subr.mxu0 0.0
        %268 = vmatpush1.msra.mxu0 0.0
        %269 = vmatprep.subr.mxu0 0.0
        %270 = vmatpush1.msra.mxu0 0.0
        %271 = vmatprep.subr.mxu0 0.0
        %272 = vmatpush1.msra.mxu0 0.0
        %273 = vmatprep.subr.mxu0 0.0
        %274 = vmatpush1.msra.mxu0 0.0
        %275 = vmatprep.subr.mxu0 0.0
        %276 = vmatpush1.msra.mxu0 0.0
        %277 = vmatprep.subr.mxu0 0.0
        %278 = vmatpush1.msra.mxu0 0.0
        %279 = vmatprep.subr.mxu0 0.0
        %280 = vmatpush1.msra.mxu0 0.0
        %281 = vmatprep.subr.mxu0 0.0
        %282 = vmatpush1.msra.mxu0 0.0
        %283 = vmatprep.subr.mxu0 0.0
        %284 = vmatpush1.msra.mxu0 0.0
        %285 = vmatprep.subr.mxu0 0.0
        %286 = vmatpush1.msra.mxu0 0.0
        %287 = vmatprep.subr.mxu0 0.0
        %288 = vmatpush1.msra.mxu0 0.0
        %289 = vmatprep.subr.mxu0 0.0
        %290 = vmatpush1.msra.mxu0 0.0
        %291 = vmatprep.subr.mxu0 0.0
        %292 = vmatpush1.msra.mxu0 0.0
        %293 = vmatprep.subr.mxu0 0.0
        %294 = vmatpush1.msra.mxu0 0.0
        %295 = vmatprep.subr.mxu0 0.0
        %296 = vmatpush1.msra.mxu0 0.0
        %297 = vmatprep.subr.mxu0 0.0
        %298 = vmatpush1.msra.mxu0 0.0
        %299 = vmatprep.subr.mxu0 0.0
        %300 = vmatpush1.msra.mxu0 0.0
        %301 = vmatprep.subr.mxu0 0.0
        %302 = vmatpush1.msra.mxu0 0.0
        %303 = vmatprep.subr.mxu0 0.0
        %304 = vmatpush1.msra.mxu0 0.0
        %305 = vmatprep.mubr.f32.mxu0 0.0
        %306 = vmatmul.mubr.f32.gmra.mrb[0].mxu0 %v239
        %v307 = vpop.f32.mrb[0].mxu0
        %v308 = vadd.f32 %v235, %v307
        %v309 = vpop.f32.mrb[0].mxu0
        %310 = vdwg.mxu0
        %v311 = vmax.f32 %v308, 0.0
        %312 = vst [vmem:[%s223] sm:$0xff] %v311
        %s313 = sand.u32 %s116, 1
        %s314 = scalar_lea.sflag [#allocation4], %s313
        %s315 = sand.u32 %s116, 1
        %s316 = smul.addr %s315, 8
        %s317 = scalar_lea.vmem [#allocation7], %s316
        // Predicated region
        $region41: #{tpu_custom_call.1} parent=31 // pred_check
          %p318 = pneg %p126
        $region42: #{tpu_custom_call.1} parent=31 // pred_check_branch
          %320 = sbr.rel (%p318) target = $region44
        $region43: #{tpu_custom_call.1} parent=31 // pred_region
          %s322 = ssub.s32 128, 128
          %323 = vsyncadd %s314, %s322
          %s324 = smul.addr %s25, 128
          %s325 = scalar_lea.hbm %s3, %s324
          %s327 = sshll.u32 %s317, 4
          %s328 = int_to_ptr.vmem [resolvable:$true] %s327
          %330 = dma.vmem_to_hbm [thread:$0]  %s328, 128, %s325, %s314
        $region44: #{tpu_custom_call.1} parent=31 // pred_fallthru
          _
      $region32: #{tpu_custom_call.1} parent=5 // pred_fallthru
        _
      %p331 = scmp.le.s32.totalorder 2, %s16
      // Predicated region
      $region45: #{tpu_custom_call.1} parent=5 // pred_check
        %p332 = pneg %p331
      $region46: #{tpu_custom_call.1} parent=5 // pred_check_branch
        %334 = sbr.rel (%p332) target = $region48
      $region47: #{tpu_custom_call.1} parent=5 // pred_region
        %s335 = ssub.s32 %s16, 2
        // Predicated region
        $region49: #{tpu_custom_call.1} parent=47 // pred_check
          %p336 = pneg %p132
        $region50: #{tpu_custom_call.1} parent=47 // pred_check_branch
          %338 = sbr.rel (%p336) target = $region52
        $region51: #{tpu_custom_call.1} parent=47 // pred_region
          %s339 = sand.u32 %s117, 1
          %s340 = scalar_lea.sflag [#allocation4], %s339
          %s341 = sand.u32 %s117, 1
          %s342 = smul.addr %s341, 8
          %s343 = scalar_lea.vmem [#allocation7], %s342
          %344 = dma.done %s340, 128
        $region52: #{tpu_custom_call.1} parent=47 // pred_fallthru
          _
      $region48: #{tpu_custom_call.1} parent=5 // pred_fallthru
        _
    $region6: #{tpu_custom_call.1} parent=1 // loop_footer
      %s20 = sadd.s32 1, %s16
    $region7: #{tpu_custom_call.1} parent=1 // loop_footer_branch
      %15 = sbr.rel target = $region3
    $region8: #{tpu_custom_call.1} parent=1 // loop_exit
      _
    %345 = vsyncpa [#allocation3], 1
    %s346 = scalar_lea.sflag [#allocation3], 1
    %347 = vsyncpa %s346, 1
    %348 = vsyncpa [#allocation6], 1
    %349 = vsyncpa [#allocation4], 1
    %s350 = scalar_lea.sflag [#allocation4], 1
    %351 = vsyncpa %s350, 1

</llo_original>
